<compile_context>
chip_gen: v7x
topology: tpu7x:2x2x1
jax: 0.10.0
libtpu: 0.0.40
codegen_flags: <defaults>
</compile_context>

<pallas_src>
import jax
import jax.numpy as jnp
import numpy as np
from jax.experimental import pallas as pl
from jax.experimental.pallas import tpu as pltpu

SEQ = 3
HID = 16


def lstm_kernel(x_ref, w_hh_ref, w_ih_ref, b_ref, w_lin_ref, b_lin_ref, y_ref):
    # x_ref:     (SEQ, TB)        inputs, batch on the lane axis (input_size=1 squeezed)
    # w_hh_ref:  (4*HID, HID)     hidden->gate weights, gate rows [i; f; g; o]
    # w_ih_ref:  (4*HID, 1)       input->gate weights (one input feature)
    # b_ref:     (4*HID, 1)       combined bias (b_ih + b_hh)
    # w_lin_ref: (HID, SEQ)       final linear weight, column t = weights for h_t
    # b_lin_ref: (1, 1)           final linear bias (SMEM scalar)
    # y_ref:     (1, TB)          lane-dense output row
    x = x_ref[...]
    w_hh = w_hh_ref[...]
    w_ih = w_ih_ref[...]
    b = b_ref[...]
    w_lin = w_lin_ref[...]

    tb = x.shape[1]

    # Input-path pre-activations do not depend on h -> hoist them out of the
    # serial recurrence (broadcasts off the critical path).
    xg = [x[t:t + 1, :] * w_ih + b for t in range(SEQ)]       # each (4*HID, TB)

    h = jnp.zeros((HID, tb), jnp.float32)
    c = jnp.zeros((HID, tb), jnp.float32)
    y_acc = jnp.zeros((HID, tb), jnp.float32)

    # SEQ is a tiny static constant -> unrolled at trace time.
    for t in range(SEQ):
        # Single fused (64,16)@(16,TB) MXU dot per step; gate slices are
        # sublane-tile aligned (rows at multiples of 16).
        gates = xg[t] + jnp.dot(w_hh, h, preferred_element_type=jnp.float32)
        i = jax.nn.sigmoid(gates[0 * HID:1 * HID, :])
        f = jax.nn.sigmoid(gates[1 * HID:2 * HID, :])
        g = jnp.tanh(gates[2 * HID:3 * HID, :])
        o = jax.nn.sigmoid(gates[3 * HID:4 * HID, :])
        c = f * c + i * g
        h = o * jnp.tanh(c)
        # Final-linear contribution on the VPU; reduce deferred to after loop.
        y_acc = y_acc + h * w_lin[:, t:t + 1]

    # One sublane (XLU) reduce -> lane-dense (1, TB) output row.
    y_ref[...] = jnp.sum(y_acc, axis=0, keepdims=True) + b_lin_ref[0, 0]


def lstm_forward(x, params, *, tb=128):
    """x: (B, SEQ, 1) float32 -> (B, 1) float32 (matches the torch forward)."""
    w_ih, w_hh, b_ih, b_hh, w_lin, b_lin = params
    B = x.shape[0]

    # Batch goes on the lane axis: transpose to (SEQ, B) and pad B so every
    # grid step gets a full lane-dense tile.
    x_t = x.reshape(B, SEQ).astype(jnp.float32).T             # (SEQ, B)
    n_tiles = pl.cdiv(B, tb)
    bp = n_tiles * tb
    if bp != B:
        x_t = jnp.pad(x_t, ((0, 0), (0, bp - B)))

    # Weight plumbing (torch gate order [i, f, g, o]; time-major linear flatten).
    w_hh_f = w_hh.astype(jnp.float32)                          # (4*HID, HID)
    w_ih_c = w_ih.reshape(4 * HID, 1).astype(jnp.float32)      # (4*HID, 1)
    b_c = (b_ih + b_hh).reshape(4 * HID, 1).astype(jnp.float32)
    w_lin_c = w_lin.reshape(SEQ, HID).T.astype(jnp.float32)    # (HID, SEQ)
    b_lin_s = b_lin.reshape(1, 1).astype(jnp.float32)          # SMEM scalar

    cost = pl.CostEstimate(
        flops=int(bp * SEQ * (2 * 4 * HID * HID + 14 * HID)),
        transcendentals=int(bp * SEQ * 5 * HID),
        bytes_accessed=int(4 * (x_t.size + bp + w_hh_f.size + w_ih_c.size
                                + b_c.size + w_lin_c.size + 1)),
    )

    out = pl.pallas_call(
        lstm_kernel,
        out_shape=jax.ShapeDtypeStruct((1, bp), jnp.float32),
        grid=(n_tiles,),
        in_specs=[
            pl.BlockSpec((SEQ, tb), lambda i: (0, i)),           # x: pipelined tiles
            pl.BlockSpec((4 * HID, HID), lambda i: (0, 0)),      # weights stay resident
            pl.BlockSpec((4 * HID, 1), lambda i: (0, 0)),
            pl.BlockSpec((4 * HID, 1), lambda i: (0, 0)),
            pl.BlockSpec((HID, SEQ), lambda i: (0, 0)),
            pl.BlockSpec(memory_space=pltpu.MemorySpace.SMEM),   # b_lin scalar
        ],
        out_specs=pl.BlockSpec((1, tb), lambda i: (0, i)),       # lane-dense output
        compiler_params=pltpu.CompilerParams(
            dimension_semantics=("parallel",)),                  # megacore on v7x
        cost_estimate=cost,
    )(x_t, w_hh_f, w_ih_c, b_c, w_lin_c, b_lin_s)

    return out[0, :B].reshape(B, 1)


def reference_forward(x, params):
    """Pure-JAX reference replicating torch nn.LSTM + nn.Linear semantics."""
    w_ih, w_hh, b_ih, b_hh, w_lin, b_lin = params
    B = x.shape[0]
    h = jnp.zeros((B, HID), jnp.float32)
    c = jnp.zeros((B, HID), jnp.float32)
    outs = []
    for t in range(SEQ):
        gates = x[:, t, :] @ w_ih.T + h @ w_hh.T + b_ih + b_hh
        i = jax.nn.sigmoid(gates[:, 0 * HID:1 * HID])
        f = jax.nn.sigmoid(gates[:, 1 * HID:2 * HID])
        g = jnp.tanh(gates[:, 2 * HID:3 * HID])
        o = jax.nn.sigmoid(gates[:, 3 * HID:4 * HID])
        c = f * c + i * g
        h = o * jnp.tanh(c)
        outs.append(h)
    seq_out = jnp.stack(outs, axis=1)                          # (B, SEQ, HID)
    flat = seq_out.reshape(B, SEQ * HID)
    return flat @ w_lin.T + b_lin


def init_params(key):
    # Same shapes as torch: weight_ih (4H, 1), weight_hh (4H, H),
    # bias_ih (4H,), bias_hh (4H,), linear weight (1, 48), linear bias (1,)
    ks = jax.random.split(key, 6)
    scale = 1.0 / np.sqrt(HID)
    w_ih = jax.random.uniform(ks[0], (4 * HID, 1), jnp.float32, -scale, scale)
    w_hh = jax.random.uniform(ks[1], (4 * HID, HID), jnp.float32, -scale, scale)
    b_ih = jax.random.uniform(ks[2], (4 * HID,), jnp.float32, -scale, scale)
    b_hh = jax.random.uniform(ks[3], (4 * HID,), jnp.float32, -scale, scale)
    lscale = 1.0 / np.sqrt(SEQ * HID)
    w_lin = jax.random.uniform(ks[4], (1, SEQ * HID), jnp.float32, -lscale, lscale)
    b_lin = jax.random.uniform(ks[5], (1,), jnp.float32, -lscale, lscale)
    return (w_ih, w_hh, b_ih, b_hh, w_lin, b_lin)


if __name__ == "__main__":
    key = jax.random.PRNGKey(0)
    pkey, xkey = jax.random.split(key)
    params = init_params(pkey)

    # Small, deterministic example consistent with the module (B, SEQ, 1).
    B = 8
    x = jax.random.normal(xkey, (B, SEQ, 1), jnp.float32)

    y = jax.block_until_ready(lstm_forward(x, params))

    y_ref = reference_forward(x, params)
    np.testing.assert_allclose(np.asarray(y), np.asarray(y_ref),
                               rtol=1e-4, atol=1e-5)
    print("KERNEL_OK")
</pallas_src>

<mosaic_0001>
module attributes {stable_mosaic.version = 11 : i64} {
  func.func @lstm_kernel(%arg0: i32, %arg1: memref<3x128xf32, #tpu.memory_space<vmem>>, %arg2: memref<64x16xf32, #tpu.memory_space<vmem>>, %arg3: memref<64x1xf32, #tpu.memory_space<vmem>>, %arg4: memref<64x1xf32, #tpu.memory_space<vmem>>, %arg5: memref<16x3xf32, #tpu.memory_space<vmem>>, %arg6: memref<1x1xf32, #tpu.memory_space<smem>>, %arg7: memref<1x128xf32, #tpu.memory_space<vmem>>) attributes {dimension_semantics = [#tpu.dimension_semantics<parallel>], iteration_bounds = array<i64: 1>, scalar_prefetch = 0 : i64, scratch_operands = 0 : i64, tpu.core_type = #tpu.core_type<tc>, window_params = [{transform_indices = @transform_0, window_bounds = array<i64: 3, 128>}, {pipeline_mode = #tpu.pipeline_mode<synchronous>, transform_indices = @transform_1, window_bounds = array<i64: 64, 16>}, {pipeline_mode = #tpu.pipeline_mode<synchronous>, transform_indices = @transform_2, window_bounds = array<i64: 64, 1>}, {pipeline_mode = #tpu.pipeline_mode<synchronous>, transform_indices = @transform_3, window_bounds = array<i64: 64, 1>}, {pipeline_mode = #tpu.pipeline_mode<synchronous>, transform_indices = @transform_4, window_bounds = array<i64: 16, 3>}, {transform_indices = @transform_5, window_bounds = array<i64: 1, 1>}, {transform_indices = @transform_6, window_bounds = array<i64: 1, 128>}]} {
    %c0 = arith.constant 0 : index
    %c0_0 = arith.constant 0 : index
    %0 = vector.load %arg1[%c0, %c0_0] : memref<3x128xf32, #tpu.memory_space<vmem>>, vector<3x128xf32>
    %c0_1 = arith.constant 0 : index
    %c0_2 = arith.constant 0 : index
    %1 = vector.load %arg2[%c0_1, %c0_2] : memref<64x16xf32, #tpu.memory_space<vmem>>, vector<64x16xf32>
    %c0_3 = arith.constant 0 : index
    %c0_4 = arith.constant 0 : index
    %2 = vector.load %arg3[%c0_3, %c0_4] : memref<64x1xf32, #tpu.memory_space<vmem>>, vector<64x1xf32>
    %c0_5 = arith.constant 0 : index
    %c0_6 = arith.constant 0 : index
    %3 = vector.load %arg4[%c0_5, %c0_6] : memref<64x1xf32, #tpu.memory_space<vmem>>, vector<64x1xf32>
    %c0_7 = arith.constant 0 : index
    %c0_8 = arith.constant 0 : index
    %4 = vector.load %arg5[%c0_7, %c0_8] : memref<16x3xf32, #tpu.memory_space<vmem>>, vector<16x3xf32>
    %5 = vector.extract_strided_slice %0 {offsets = [0, 0], sizes = [1, 128], strides = [1, 1]} : vector<3x128xf32> to vector<1x128xf32>
    %6 = vector.broadcast %5 : vector<1x128xf32> to vector<64x128xf32>
    %7 = vector.broadcast %2 : vector<64x1xf32> to vector<64x128xf32>
    %8 = arith.mulf %6, %7 : vector<64x128xf32>
    %9 = vector.broadcast %3 : vector<64x1xf32> to vector<64x128xf32>
    %10 = arith.addf %8, %9 : vector<64x128xf32>
    %11 = vector.extract_strided_slice %0 {offsets = [1, 0], sizes = [1, 128], strides = [1, 1]} : vector<3x128xf32> to vector<1x128xf32>
    %12 = vector.broadcast %11 : vector<1x128xf32> to vector<64x128xf32>
    %13 = vector.broadcast %2 : vector<64x1xf32> to vector<64x128xf32>
    %14 = arith.mulf %12, %13 : vector<64x128xf32>
    %15 = vector.broadcast %3 : vector<64x1xf32> to vector<64x128xf32>
    %16 = arith.addf %14, %15 : vector<64x128xf32>
    %17 = vector.extract_strided_slice %0 {offsets = [2, 0], sizes = [1, 128], strides = [1, 1]} : vector<3x128xf32> to vector<1x128xf32>
    %18 = vector.broadcast %17 : vector<1x128xf32> to vector<64x128xf32>
    %19 = vector.broadcast %2 : vector<64x1xf32> to vector<64x128xf32>
    %20 = arith.mulf %18, %19 : vector<64x128xf32>
    %21 = vector.broadcast %3 : vector<64x1xf32> to vector<64x128xf32>
    %22 = arith.addf %20, %21 : vector<64x128xf32>
    %cst = arith.constant 0.000000e+00 : f32
    %23 = vector.broadcast %cst : f32 to vector<16x128xf32>
    %cst_9 = arith.constant 0.000000e+00 : f32
    %24 = vector.broadcast %cst_9 : f32 to vector<16x128xf32>
    %cst_10 = arith.constant 0.000000e+00 : f32
    %25 = vector.broadcast %cst_10 : f32 to vector<16x128xf32>
    %cst_11 = arith.constant dense<0.000000e+00> : vector<64x128xf32>
    %26 = tpu.matmul %1, %23, %cst_11 {dimension_numbers = #tpu.dot_dimension_numbers<[1], [0], [0], [1], [0, 0, 1, 1], [], []>} : vector<64x16xf32>, vector<16x128xf32>, vector<64x128xf32> -> vector<64x128xf32>
    %27 = arith.addf %10, %26 : vector<64x128xf32>
    %28 = vector.extract_strided_slice %27 {offsets = [0, 0], sizes = [16, 128], strides = [1, 1]} : vector<64x128xf32> to vector<16x128xf32>
    %29 = arith.negf %28 : vector<16x128xf32>
    %30 = math.exp %29 : vector<16x128xf32>
    %cst_12 = arith.constant 1.000000e+00 : f32
    %31 = vector.broadcast %cst_12 : f32 to vector<16x128xf32>
    %32 = arith.addf %31, %30 : vector<16x128xf32>
    %33 = arith.divf %31, %32 : vector<16x128xf32>
    %34 = vector.extract_strided_slice %27 {offsets = [16, 0], sizes = [16, 128], strides = [1, 1]} : vector<64x128xf32> to vector<16x128xf32>
    %35 = arith.negf %34 : vector<16x128xf32>
    %36 = math.exp %35 : vector<16x128xf32>
    %cst_13 = arith.constant 1.000000e+00 : f32
    %37 = vector.broadcast %cst_13 : f32 to vector<16x128xf32>
    %38 = arith.addf %37, %36 : vector<16x128xf32>
    %39 = arith.divf %37, %38 : vector<16x128xf32>
    %40 = vector.extract_strided_slice %27 {offsets = [32, 0], sizes = [16, 128], strides = [1, 1]} : vector<64x128xf32> to vector<16x128xf32>
    %41 = math.tanh %40 : vector<16x128xf32>
    %42 = vector.extract_strided_slice %27 {offsets = [48, 0], sizes = [16, 128], strides = [1, 1]} : vector<64x128xf32> to vector<16x128xf32>
    %43 = arith.negf %42 : vector<16x128xf32>
    %44 = math.exp %43 : vector<16x128xf32>
    %cst_14 = arith.constant 1.000000e+00 : f32
    %45 = vector.broadcast %cst_14 : f32 to vector<16x128xf32>
    %46 = arith.addf %45, %44 : vector<16x128xf32>
    %47 = arith.divf %45, %46 : vector<16x128xf32>
    %48 = arith.mulf %39, %24 : vector<16x128xf32>
    %49 = arith.mulf %33, %41 : vector<16x128xf32>
    %50 = arith.addf %48, %49 : vector<16x128xf32>
    %51 = math.tanh %50 : vector<16x128xf32>
    %52 = arith.mulf %47, %51 : vector<16x128xf32>
    %53 = vector.extract_strided_slice %4 {offsets = [0, 0], sizes = [16, 1], strides = [1, 1]} : vector<16x3xf32> to vector<16x1xf32>
    %54 = vector.broadcast %53 : vector<16x1xf32> to vector<16x128xf32>
    %55 = arith.mulf %52, %54 : vector<16x128xf32>
    %56 = arith.addf %25, %55 : vector<16x128xf32>
    %cst_15 = arith.constant dense<0.000000e+00> : vector<64x128xf32>
    %57 = tpu.matmul %1, %52, %cst_15 {dimension_numbers = #tpu.dot_dimension_numbers<[1], [0], [0], [1], [0, 0, 1, 1], [], []>} : vector<64x16xf32>, vector<16x128xf32>, vector<64x128xf32> -> vector<64x128xf32>
    %58 = arith.addf %16, %57 : vector<64x128xf32>
    %59 = vector.extract_strided_slice %58 {offsets = [0, 0], sizes = [16, 128], strides = [1, 1]} : vector<64x128xf32> to vector<16x128xf32>
    %60 = arith.negf %59 : vector<16x128xf32>
    %61 = math.exp %60 : vector<16x128xf32>
    %cst_16 = arith.constant 1.000000e+00 : f32
    %62 = vector.broadcast %cst_16 : f32 to vector<16x128xf32>
    %63 = arith.addf %62, %61 : vector<16x128xf32>
    %64 = arith.divf %62, %63 : vector<16x128xf32>
    %65 = vector.extract_strided_slice %58 {offsets = [16, 0], sizes = [16, 128], strides = [1, 1]} : vector<64x128xf32> to vector<16x128xf32>
    %66 = arith.negf %65 : vector<16x128xf32>
    %67 = math.exp %66 : vector<16x128xf32>
    %cst_17 = arith.constant 1.000000e+00 : f32
    %68 = vector.broadcast %cst_17 : f32 to vector<16x128xf32>
    %69 = arith.addf %68, %67 : vector<16x128xf32>
    %70 = arith.divf %68, %69 : vector<16x128xf32>
    %71 = vector.extract_strided_slice %58 {offsets = [32, 0], sizes = [16, 128], strides = [1, 1]} : vector<64x128xf32> to vector<16x128xf32>
    %72 = math.tanh %71 : vector<16x128xf32>
    %73 = vector.extract_strided_slice %58 {offsets = [48, 0], sizes = [16, 128], strides = [1, 1]} : vector<64x128xf32> to vector<16x128xf32>
    %74 = arith.negf %73 : vector<16x128xf32>
    %75 = math.exp %74 : vector<16x128xf32>
    %cst_18 = arith.constant 1.000000e+00 : f32
    %76 = vector.broadcast %cst_18 : f32 to vector<16x128xf32>
    %77 = arith.addf %76, %75 : vector<16x128xf32>
    %78 = arith.divf %76, %77 : vector<16x128xf32>
    %79 = arith.mulf %70, %50 : vector<16x128xf32>
    %80 = arith.mulf %64, %72 : vector<16x128xf32>
    %81 = arith.addf %79, %80 : vector<16x128xf32>
    %82 = math.tanh %81 : vector<16x128xf32>
    %83 = arith.mulf %78, %82 : vector<16x128xf32>
    %84 = vector.extract_strided_slice %4 {offsets = [0, 1], sizes = [16, 1], strides = [1, 1]} : vector<16x3xf32> to vector<16x1xf32>
    %85 = vector.broadcast %84 : vector<16x1xf32> to vector<16x128xf32>
    %86 = arith.mulf %83, %85 : vector<16x128xf32>
    %87 = arith.addf %56, %86 : vector<16x128xf32>
    %cst_19 = arith.constant dense<0.000000e+00> : vector<64x128xf32>
    %88 = tpu.matmul %1, %83, %cst_19 {dimension_numbers = #tpu.dot_dimension_numbers<[1], [0], [0], [1], [0, 0, 1, 1], [], []>} : vector<64x16xf32>, vector<16x128xf32>, vector<64x128xf32> -> vector<64x128xf32>
    %89 = arith.addf %22, %88 : vector<64x128xf32>
    %90 = vector.extract_strided_slice %89 {offsets = [0, 0], sizes = [16, 128], strides = [1, 1]} : vector<64x128xf32> to vector<16x128xf32>
    %91 = arith.negf %90 : vector<16x128xf32>
    %92 = math.exp %91 : vector<16x128xf32>
    %cst_20 = arith.constant 1.000000e+00 : f32
    %93 = vector.broadcast %cst_20 : f32 to vector<16x128xf32>
    %94 = arith.addf %93, %92 : vector<16x128xf32>
    %95 = arith.divf %93, %94 : vector<16x128xf32>
    %96 = vector.extract_strided_slice %89 {offsets = [16, 0], sizes = [16, 128], strides = [1, 1]} : vector<64x128xf32> to vector<16x128xf32>
    %97 = arith.negf %96 : vector<16x128xf32>
    %98 = math.exp %97 : vector<16x128xf32>
    %cst_21 = arith.constant 1.000000e+00 : f32
    %99 = vector.broadcast %cst_21 : f32 to vector<16x128xf32>
    %100 = arith.addf %99, %98 : vector<16x128xf32>
    %101 = arith.divf %99, %100 : vector<16x128xf32>
    %102 = vector.extract_strided_slice %89 {offsets = [32, 0], sizes = [16, 128], strides = [1, 1]} : vector<64x128xf32> to vector<16x128xf32>
    %103 = math.tanh %102 : vector<16x128xf32>
    %104 = vector.extract_strided_slice %89 {offsets = [48, 0], sizes = [16, 128], strides = [1, 1]} : vector<64x128xf32> to vector<16x128xf32>
    %105 = arith.negf %104 : vector<16x128xf32>
    %106 = math.exp %105 : vector<16x128xf32>
    %cst_22 = arith.constant 1.000000e+00 : f32
    %107 = vector.broadcast %cst_22 : f32 to vector<16x128xf32>
    %108 = arith.addf %107, %106 : vector<16x128xf32>
    %109 = arith.divf %107, %108 : vector<16x128xf32>
    %110 = arith.mulf %101, %81 : vector<16x128xf32>
    %111 = arith.mulf %95, %103 : vector<16x128xf32>
    %112 = arith.addf %110, %111 : vector<16x128xf32>
    %113 = math.tanh %112 : vector<16x128xf32>
    %114 = arith.mulf %109, %113 : vector<16x128xf32>
    %115 = vector.extract_strided_slice %4 {offsets = [0, 2], sizes = [16, 1], strides = [1, 1]} : vector<16x3xf32> to vector<16x1xf32>
    %116 = vector.broadcast %115 : vector<16x1xf32> to vector<16x128xf32>
    %117 = arith.mulf %114, %116 : vector<16x128xf32>
    %118 = arith.addf %87, %117 : vector<16x128xf32>
    %cst_23 = arith.constant dense<0.000000e+00> : vector<128xf32>
    %119 = vector.multi_reduction <add>, %118, %cst_23 [0] : vector<16x128xf32> to vector<128xf32>
    %120 = vector.shape_cast %119 : vector<128xf32> to vector<1x128xf32>
    %c0_24 = arith.constant 0 : index
    %c0_25 = arith.constant 0 : index
    %121 = memref.load %arg6[%c0_24, %c0_25] : memref<1x1xf32, #tpu.memory_space<smem>>
    %122 = vector.broadcast %121 : f32 to vector<1x128xf32>
    %123 = arith.addf %120, %122 : vector<1x128xf32>
    %c0_26 = arith.constant 0 : index
    %c0_27 = arith.constant 0 : index
    %124 = vector.load %arg7[%c0_26, %c0_27] : memref<1x128xf32, #tpu.memory_space<vmem>>, vector<1x128xf32>
    tpu.vector_store %arg7[%c0_26, %c0_27], %123 {strides = array<i32>} : memref<1x128xf32, #tpu.memory_space<vmem>>, vector<1x128xf32>,
    return
  }
  func.func @transform_0(%arg0: i32) -> (i32, i32) {
    %c0_i32 = arith.constant 0 : i32
    %c0_i32_0 = arith.constant 0 : i32
    return %c0_i32, %arg0 : i32, i32
  }
  func.func @transform_1(%arg0: i32) -> (i32, i32) {
    %c0_i32 = arith.constant 0 : i32
    %c0_i32_0 = arith.constant 0 : i32
    %c0_i32_1 = arith.constant 0 : i32
    return %c0_i32, %c0_i32_0 : i32, i32
  }
  func.func @transform_2(%arg0: i32) -> (i32, i32) {
    %c0_i32 = arith.constant 0 : i32
    %c0_i32_0 = arith.constant 0 : i32
    %c0_i32_1 = arith.constant 0 : i32
    return %c0_i32, %c0_i32_0 : i32, i32
  }
  func.func @transform_3(%arg0: i32) -> (i32, i32) {
    %c0_i32 = arith.constant 0 : i32
    %c0_i32_0 = arith.constant 0 : i32
    %c0_i32_1 = arith.constant 0 : i32
    return %c0_i32, %c0_i32_0 : i32, i32
  }
  func.func @transform_4(%arg0: i32) -> (i32, i32) {
    %c0_i32 = arith.constant 0 : i32
    %c0_i32_0 = arith.constant 0 : i32
    %c0_i32_1 = arith.constant 0 : i32
    return %c0_i32, %c0_i32_0 : i32, i32
  }
  func.func @transform_5(%arg0: i32) -> (i32, i32) {
    %c0_i32 = arith.constant 0 : i32
    %c0_i32_0 = arith.constant 0 : i32
    %c0_i32_1 = arith.constant 0 : i32
    return %c0_i32, %c0_i32_0 : i32, i32
  }
  func.func @transform_6(%arg0: i32) -> (i32, i32) {
    %c0_i32 = arith.constant 0 : i32
    %c0_i32_0 = arith.constant 0 : i32
    return %c0_i32, %arg0 : i32, i32
  }
}

</mosaic_0001>

<llo_original>
// kernel: tpu_custom_call.1
$region0: #{tpu_custom_call.1}
  #allocation0 [shape = 'u32[]', space=smem, size = 0x4, offset = 0x4, fixed_abs, tag = 'smem constant byte address 0x4 - core index']
  #allocation1 [shape = 'u32[144,128]{1,0:T(1,128)}', space=vmem, size = 0x12000, scoped, tag = 'internal scratch']
  #allocation2 [shape = 'f32[1,1]{1,0:T(1,128)S(6)}', space=smem, size = 0x200, scoped, tag = 'scoped memory for tpu_custom_call.1']
  %s0 = inlined_call_operand.vmem [shape: f32[3,128], index: 0, kind: input, shape index: {}]
  %s1 = inlined_call_operand.vmem [shape: f32[64,16], index: 1, kind: input, shape index: {}]
  %s2 = inlined_call_operand.vmem [shape: f32[64,1], index: 2, kind: input, shape index: {}]
  %s3 = inlined_call_operand.vmem [shape: f32[64,1], index: 3, kind: input, shape index: {}]
  %s4 = inlined_call_operand.vmem [shape: f32[16,3], index: 4, kind: input, shape index: {}]
  %s5 = inlined_call_operand.<no memory space> [shape: f32[1,1], index: 5, kind: input, shape index: {}]
  %s6 = inlined_call_operand.hbm [shape: f32[1,128], index: 6, kind: output, shape index: {}]
  %s7 = sld [smem:[#allocation0]]
  $region34: #{tpu_custom_call.1} parent=0
    _
  %s9 = ssub.s32 1, %s7
  %s10 = scalar_select 0, %s9, %s7
  %11 = sst [smem:[#allocation2]] %s5
  $region1: #{tpu_custom_call.1} parent=0
    #allocation3 [shape = 'u8[512]{0}', space=vmem, size = 0x400, scoped, tag = 'output window, operand 0, single buffered']
    #allocation4 [shape = 's32[1]{0}', space=sflag, size = 0x4, scoped, tag = 'scoped memory for tpu_custom_call.1']
    %12 = vsyncpa [#allocation4], 0
    // Predicated region
    $region2: #{tpu_custom_call.1} parent=1 // pred_check
      _
    $region3: #{tpu_custom_call.1} parent=1 // pred_check_branch
      %14 = sbr.rel (0) target = $region5
    $region4: #{tpu_custom_call.1} parent=1 // pred_region
      _
    $region5: #{tpu_custom_call.1} parent=1 // pred_fallthru
      _
    // Predicated region
    $region6: #{tpu_custom_call.1} parent=1 // pred_check
      _
    $region7: #{tpu_custom_call.1} parent=1 // pred_check_branch
      %16 = sbr.rel (0) target = $region9
    $region8: #{tpu_custom_call.1} parent=1 // pred_region
      _
    $region9: #{tpu_custom_call.1} parent=1 // pred_fallthru
      _
    // Predicated region
    $region10: #{tpu_custom_call.1} parent=1 // pred_check
      _
    $region11: #{tpu_custom_call.1} parent=1 // pred_check_branch
      %18 = sbr.rel (0) target = $region13
    $region12: #{tpu_custom_call.1} parent=1 // pred_region
      _
    $region13: #{tpu_custom_call.1} parent=1 // pred_fallthru
      _
    // Predicated region
    $region14: #{tpu_custom_call.1} parent=1 // pred_check
      _
    $region15: #{tpu_custom_call.1} parent=1 // pred_check_branch
      %20 = sbr.rel (0) target = $region17
    $region16: #{tpu_custom_call.1} parent=1 // pred_region
      _
    $region17: #{tpu_custom_call.1} parent=1 // pred_fallthru
      _
    // Predicated region
    $region18: #{tpu_custom_call.1} parent=1 // pred_check
      _
    $region19: #{tpu_custom_call.1} parent=1 // pred_check_branch
      %22 = sbr.rel (0) target = $region21
    $region20: #{tpu_custom_call.1} parent=1 // pred_region
      _
    $region21: #{tpu_custom_call.1} parent=1 // pred_fallthru
      _
    // Predicated region
    $region22: #{tpu_custom_call.1} parent=1 // pred_check
      _
    $region23: #{tpu_custom_call.1} parent=1 // pred_check_branch
      %24 = sbr.rel (0) target = $region25
    $region24: #{tpu_custom_call.1} parent=1 // pred_region
      _
    $region25: #{tpu_custom_call.1} parent=1 // pred_fallthru
      _
    %v25 = vld [vmem:[%s0] sm:$0x7]
    %v26 = vld [vmem:[%s1] sm:$0xff]
    %v27 = vld [vmem:[%s1 + $0x8] sm:$0xff]
    %v28 = vld [vmem:[%s1 + $0x10] sm:$0xff]
    %v29 = vld [vmem:[%s1 + $0x18] sm:$0xff]
    %v30 = vld [vmem:[%s1 + $0x20] sm:$0xff]
    %v31 = vld [vmem:[%s1 + $0x28] sm:$0xff]
    %v32 = vld [vmem:[%s1 + $0x30] sm:$0xff]
    %v33 = vld [vmem:[%s1 + $0x38] sm:$0xff]
    %v34 = vld [vmem:[%s2] sm:$0xff]
    %v35 = vld [vmem:[%s2 + $0x8] sm:$0xff]
    %v36 = vld [vmem:[%s2 + $0x10] sm:$0xff]
    %v37 = vld [vmem:[%s2 + $0x18] sm:$0xff]
    %v38 = vld [vmem:[%s2 + $0x20] sm:$0xff]
    %v39 = vld [vmem:[%s2 + $0x28] sm:$0xff]
    %v40 = vld [vmem:[%s2 + $0x30] sm:$0xff]
    %v41 = vld [vmem:[%s2 + $0x38] sm:$0xff]
    %v42 = vld [vmem:[%s3] sm:$0xff]
    %v43 = vld [vmem:[%s3 + $0x8] sm:$0xff]
    %v44 = vld [vmem:[%s3 + $0x10] sm:$0xff]
    %v45 = vld [vmem:[%s3 + $0x18] sm:$0xff]
    %v46 = vld [vmem:[%s3 + $0x20] sm:$0xff]
    %v47 = vld [vmem:[%s3 + $0x28] sm:$0xff]
    %v48 = vld [vmem:[%s3 + $0x30] sm:$0xff]
    %v49 = vld [vmem:[%s3 + $0x38] sm:$0xff]
    %v50 = vld [vmem:[%s4] sm:$0xff]
    %v51 = vld [vmem:[%s4 + $0x8] sm:$0xff]
    %v52 = vlaneseq
    %v53 = vshrl.u32 %v52, 7
    %v54 = vsub.s32 0, %v53
    %v55 = vrot.slane %v25, %v54
    %57 = vset.pattern.permute.xlu0 0
    %58 = vperm.xlu0 %57, %v34
    %v59 = vpop.permute.xlu0 %58
    %62 = vset.pattern.permute.xlu0 0
    %63 = vperm.xlu0 %62, %v35
    %v64 = vpop.permute.xlu0 %63
    %67 = vset.pattern.permute.xlu0 0
    %68 = vperm.xlu0 %67, %v36
    %v69 = vpop.permute.xlu0 %68
    %72 = vset.pattern.permute.xlu0 0
    %73 = vperm.xlu0 %72, %v37
    %v74 = vpop.permute.xlu0 %73
    %77 = vset.pattern.permute.xlu0 0
    %78 = vperm.xlu0 %77, %v38
    %v79 = vpop.permute.xlu0 %78
    %82 = vset.pattern.permute.xlu0 0
    %83 = vperm.xlu0 %82, %v39
    %v84 = vpop.permute.xlu0 %83
    %87 = vset.pattern.permute.xlu0 0
    %88 = vperm.xlu0 %87, %v40
    %v89 = vpop.permute.xlu0 %88
    %92 = vset.pattern.permute.xlu0 0
    %93 = vperm.xlu0 %92, %v41
    %v94 = vpop.permute.xlu0 %93
    %v96 = vmul.f32 %v55, %v59
    %v97 = vmul.f32 %v55, %v64
    %v98 = vmul.f32 %v55, %v69
    %v99 = vmul.f32 %v55, %v74
    %v100 = vmul.f32 %v55, %v79
    %v101 = vmul.f32 %v55, %v84
    %v102 = vmul.f32 %v55, %v89
    %v103 = vmul.f32 %v55, %v94
    %105 = vset.pattern.permute.xlu0 0
    %106 = vperm.xlu0 %105, %v42
    %v107 = vpop.permute.xlu0 %106
    %110 = vset.pattern.permute.xlu0 0
    %111 = vperm.xlu0 %110, %v43
    %v112 = vpop.permute.xlu0 %111
    %115 = vset.pattern.permute.xlu0 0
    %116 = vperm.xlu0 %115, %v44
    %v117 = vpop.permute.xlu0 %116
    %120 = vset.pattern.permute.xlu0 0
    %121 = vperm.xlu0 %120, %v45
    %v122 = vpop.permute.xlu0 %121
    %125 = vset.pattern.permute.xlu0 0
    %126 = vperm.xlu0 %125, %v46
    %v127 = vpop.permute.xlu0 %126
    %130 = vset.pattern.permute.xlu0 0
    %131 = vperm.xlu0 %130, %v47
    %v132 = vpop.permute.xlu0 %131
    %135 = vset.pattern.permute.xlu0 0
    %136 = vperm.xlu0 %135, %v48
    %v137 = vpop.permute.xlu0 %136
    %140 = vset.pattern.permute.xlu0 0
    %141 = vperm.xlu0 %140, %v49
    %v142 = vpop.permute.xlu0 %141
    %v144 = vadd.f32 %v96, %v107
    %v145 = vadd.f32 %v97, %v112
    %v146 = vadd.f32 %v98, %v117
    %v147 = vadd.f32 %v99, %v122
    %v148 = vadd.f32 %v100, %v127
    %v149 = vadd.f32 %v101, %v132
    %v150 = vadd.f32 %v102, %v137
    %v151 = vadd.f32 %v103, %v142
    %v152 = vlaneseq
    %v153 = vshrl.u32 %v152, 7
    %v154 = vsub.s32 1, %v153
    %v155 = vrot.slane %v25, %v154
    %v156 = vmul.f32 %v155, %v59
    %v157 = vmul.f32 %v155, %v64
    %v158 = vmul.f32 %v155, %v69
    %v159 = vmul.f32 %v155, %v74
    %v160 = vmul.f32 %v155, %v79
    %v161 = vmul.f32 %v155, %v84
    %v162 = vmul.f32 %v155, %v89
    %v163 = vmul.f32 %v155, %v94
    %v164 = vadd.f32 %v156, %v107
    %v165 = vadd.f32 %v157, %v112
    %v166 = vadd.f32 %v158, %v117
    %v167 = vadd.f32 %v159, %v122
    %v168 = vadd.f32 %v160, %v127
    %v169 = vadd.f32 %v161, %v132
    %v170 = vadd.f32 %v162, %v137
    %v171 = vadd.f32 %v163, %v142
    %v172 = vlaneseq
    %v173 = vshrl.u32 %v172, 7
    %v174 = vsub.s32 2, %v173
    %v175 = vrot.slane %v25, %v174
    %v176 = vmul.f32 %v175, %v59
    %v177 = vmul.f32 %v175, %v64
    %v178 = vmul.f32 %v175, %v69
    %v179 = vmul.f32 %v175, %v74
    %v180 = vmul.f32 %v175, %v79
    %v181 = vmul.f32 %v175, %v84
    %v182 = vmul.f32 %v175, %v89
    %v183 = vmul.f32 %v175, %v94
    %v184 = vadd.f32 %v176, %v107
    %v185 = vadd.f32 %v177, %v112
    %v186 = vadd.f32 %v178, %v117
    %v187 = vadd.f32 %v179, %v122
    %v188 = vadd.f32 %v180, %v127
    %v189 = vadd.f32 %v181, %v132
    %v190 = vadd.f32 %v182, %v137
    %v191 = vadd.f32 %v183, %v142
    %vm192 = vcmask 130048
    %v194 = vsel %vm192, %v26, 0
    %v197 = vsel %vm192, %v27, 0
    %v200 = vsel %vm192, %v28, 0
    %v203 = vsel %vm192, %v29, 0
    %v206 = vsel %vm192, %v30, 0
    %v209 = vsel %vm192, %v31, 0
    %v212 = vsel %vm192, %v32, 0
    %v215 = vsel %vm192, %v33, 0
    %217 = vmatprep.subr.mxu0 0.0
    %218 = vmatpush1.msra.mxu0 0.0
    %219 = vmatprep.subr.mxu0 0.0
    %220 = vmatpush1.msra.mxu0 0.0
    %221 = vmatprep.subr.mxu0 0.0
    %222 = vmatpush1.msra.mxu0 0.0
    %223 = vmatprep.subr.mxu0 0.0
    %224 = vmatpush1.msra.mxu0 0.0
    %225 = vmatprep.subr.mxu0 0.0
    %226 = vmatpush1.msra.mxu0 0.0
    %227 = vmatprep.subr.mxu0 0.0
    %228 = vmatpush1.msra.mxu0 0.0
    %229 = vmatprep.subr.mxu0 0.0
    %230 = vmatpush1.msra.mxu0 0.0
    %231 = vmatprep.subr.mxu0 0.0
    %232 = vmatpush1.msra.mxu0 0.0
    %233 = vmatprep.subr.mxu0 0.0
    %234 = vmatpush1.msra.mxu0 0.0
    %235 = vmatprep.subr.mxu0 0.0
    %236 = vmatpush1.msra.mxu0 0.0
    %237 = vmatprep.subr.mxu0 0.0
    %238 = vmatpush1.msra.mxu0 0.0
    %239 = vmatprep.subr.mxu0 0.0
    %240 = vmatpush1.msra.mxu0 0.0
    %241 = vmatprep.subr.mxu0 0.0
    %242 = vmatpush1.msra.mxu0 0.0
    %243 = vmatprep.subr.mxu0 0.0
    %244 = vmatpush1.msra.mxu0 0.0
    %245 = vmatprep.subr.mxu0 0.0
    %246 = vmatpush1.msra.mxu0 0.0
    %247 = vmatprep.subr.mxu0 0.0
    %248 = vmatpush1.msra.mxu0 0.0
    %249 = vmatprep.subr.mxu0 0.0
    %250 = vmatpush1.msra.mxu0 0.0
    %251 = vmatprep.subr.mxu0 0.0
    %252 = vmatpush1.msra.mxu0 0.0
    %253 = vmatprep.subr.mxu0 0.0
    %254 = vmatpush1.msra.mxu0 0.0
    %255 = vmatprep.subr.mxu0 0.0
    %256 = vmatpush1.msra.mxu0 0.0
    %257 = vmatprep.subr.mxu0 0.0
    %258 = vmatpush1.msra.mxu0 0.0
    %259 = vmatprep.subr.mxu0 0.0
    %260 = vmatpush1.msra.mxu0 0.0
    %261 = vmatprep.subr.mxu0 0.0
    %262 = vmatpush1.msra.mxu0 0.0
    %263 = vmatprep.subr.mxu0 0.0
    %264 = vmatpush1.msra.mxu0 0.0
    %265 = vmatprep.subr.mxu0 0.0
    %266 = vmatpush1.msra.mxu0 0.0
    %267 = vmatprep.subr.mxu0 0.0
    %268 = vmatpush1.msra.mxu0 0.0
    %269 = vmatprep.subr.mxu0 0.0
    %270 = vmatpush1.msra.mxu0 0.0
    %271 = vmatprep.subr.mxu0 0.0
    %272 = vmatpush1.msra.mxu0 0.0
    %273 = vmatprep.subr.mxu0 0.0
    %274 = vmatpush1.msra.mxu0 0.0
    %275 = vmatprep.subr.mxu0 0.0
    %276 = vmatpush1.msra.mxu0 0.0
    %277 = vmatprep.subr.mxu0 0.0
    %278 = vmatpush1.msra.mxu0 0.0
    %279 = vmatprep.subr.mxu0 0.0
    %280 = vmatpush1.msra.mxu0 0.0
    %281 = vmatprep.mubr.f32.mxu0 0.0
    %282 = vmatmul.mubr.f32.gmra.mrb[0].mxu0 %v194
    %v283 = vpop.f32.mrb[0].mxu0
    %v284 = vadd.f32 0.0, %v283
    %v285 = vpop.f32.mrb[0].mxu0
    %286 = vmatprep.mubr.f32.mxu0 0.0
    %287 = vmatmul.mubr.f32.gmra.mrb[0].mxu0 %v197
    %v288 = vpop.f32.mrb[0].mxu0
    %v289 = vadd.f32 0.0, %v288
    %v290 = vpop.f32.mrb[0].mxu0
    %291 = vmatprep.mubr.f32.mxu0 0.0
    %292 = vmatmul.mubr.f32.gmra.mrb[0].mxu0 %v200
    %v293 = vpop.f32.mrb[0].mxu0
    %v294 = vadd.f32 0.0, %v293
    %v295 = vpop.f32.mrb[0].mxu0
    %296 = vmatprep.mubr.f32.mxu0 0.0
    %297 = vmatmul.mubr.f32.gmra.mrb[0].mxu0 %v203
    %v298 = vpop.f32.mrb[0].mxu0
    %v299 = vadd.f32 0.0, %v298
    %v300 = vpop.f32.mrb[0].mxu0
    %301 = vmatprep.mubr.f32.mxu0 0.0
    %302 = vmatmul.mubr.f32.gmra.mrb[0].mxu0 %v206
    %v303 = vpop.f32.mrb[0].mxu0
    %v304 = vadd.f32 0.0, %v303
    %v305 = vpop.f32.mrb[0].mxu0
    %306 = vmatprep.mubr.f32.mxu0 0.0
    %307 = vmatmul.mubr.f32.gmra.mrb[0].mxu0 %v209
    %v308 = vpop.f32.mrb[0].mxu0
    %v309 = vadd.f32 0.0, %v308
    %v310 = vpop.f32.mrb[0].mxu0
    %311 = vmatprep.mubr.f32.mxu0 0.0
    %312 = vmatmul.mubr.f32.gmra.mrb[0].mxu0 %v212
    %v313 = vpop.f32.mrb[0].mxu0
    %v314 = vadd.f32 0.0, %v313
    %v315 = vpop.f32.mrb[0].mxu0
    %316 = vmatprep.mubr.f32.mxu0 0.0
    %317 = vmatmul.mubr.f32.gmra.mrb[0].mxu0 %v215
    %v318 = vpop.f32.mrb[0].mxu0
    %v319 = vadd.f32 0.0, %v318
    %v320 = vpop.f32.mrb[0].mxu0
    %321 = vdwg.mxu0
    %v322 = vadd.f32 %v144, %v284
    %v323 = vadd.f32 %v145, %v289
    %v324 = vadd.f32 %v146, %v294
    %v325 = vadd.f32 %v147, %v299
    %v326 = vadd.f32 %v148, %v304
    %v327 = vadd.f32 %v149, %v309
    %v328 = vadd.f32 %v150, %v314
    %v329 = vadd.f32 %v151, %v319
    %v330 = vxor.u32 %v322, 2147483648
    %v331 = vxor.u32 %v323, 2147483648
    %v332 = vmul.f32 %v330, 1.442695
    %v333 = vpow.pop %v332
    %v334 = vmul.f32 %v331, 1.442695
    %v335 = vpow.pop %v334
    %v336 = vadd.f32 %v333, 1.0
    %v337 = vadd.f32 %v335, 1.0
    %v338 = vrcp.pop %v336
    %v339 = vmul.f32 1.0, %v338
    %v340 = vrcp.pop %v337
    %v341 = vmul.f32 1.0, %v340
    %v342 = vxor.u32 %v324, 2147483648
    %v343 = vxor.u32 %v325, 2147483648
    %v344 = vmul.f32 %v342, 1.442695
    %v345 = vpow.pop %v344
    %v346 = vmul.f32 %v343, 1.442695
    %v347 = vpow.pop %v346
    %v348 = vadd.f32 %v345, 1.0
    %v349 = vadd.f32 %v347, 1.0
    %v350 = vrcp.pop %v348
    %v351 = vmul.f32 1.0, %v350
    %v352 = vrcp.pop %v349
    %v353 = vmul.f32 1.0, %v352
    %v354 = vtanh.pop %v326
    %v355 = vtanh.pop %v327
    %v356 = vxor.u32 %v328, 2147483648
    %v357 = vxor.u32 %v329, 2147483648
    %v358 = vmul.f32 %v356, 1.442695
    %v359 = vpow.pop %v358
    %v360 = vmul.f32 %v357, 1.442695
    %v361 = vpow.pop %v360
    %v362 = vadd.f32 %v359, 1.0
    %v363 = vadd.f32 %v361, 1.0
    %v364 = vrcp.pop %v362
    %v365 = vmul.f32 1.0, %v364
    %v366 = vrcp.pop %v363
    %v367 = vmul.f32 1.0, %v366
    %v368 = vmul.f32 %v351, 0.0
    %v369 = vmul.f32 %v353, 0.0
    %v370 = vmul.f32 %v339, %v354
    %v371 = vmul.f32 %v341, %v355
    %v372 = vadd.f32 %v368, %v370
    %v373 = vadd.f32 %v369, %v371
    %v374 = vtanh.pop %v372
    %v375 = vtanh.pop %v373
    %v376 = vmul.f32 %v365, %v374
    %v377 = vmul.f32 %v367, %v375
    %379 = vset.pattern.permute.xlu0 0
    %380 = vperm.xlu0 %379, %v50
    %v381 = vpop.permute.xlu0 %380
    %384 = vset.pattern.permute.xlu0 0
    %385 = vperm.xlu0 %384, %v51
    %v386 = vpop.permute.xlu0 %385
    %v388 = vmul.f32 %v376, %v381
    %v389 = vmul.f32 %v377, %v386
    %v390 = vadd.f32 %v388, 0.0
    %v391 = vadd.f32 %v389, 0.0
    %392 = vmatprep.subr.mxu0 0.0
    %393 = vmatpush1.msra.mxu0 %v376
    %394 = vmatprep.subr.mxu0 0.0
    %395 = vmatpush1.msra.mxu0 %v377
    %396 = vmatprep.subr.mxu0 0.0
    %397 = vmatpush1.msra.mxu0 0.0
    %398 = vmatprep.subr.mxu0 0.0
    %399 = vmatpush1.msra.mxu0 0.0
    %400 = vmatprep.subr.mxu0 0.0
    %401 = vmatpush1.msra.mxu0 0.0
    %402 = vmatprep.subr.mxu0 0.0
    %403 = vmatpush1.msra.mxu0 0.0
    %404 = vmatprep.subr.mxu0 0.0
    %405 = vmatpush1.msra.mxu0 0.0
    %406 = vmatprep.subr.mxu0 0.0
    %407 = vmatpush1.msra.mxu0 0.0
    %408 = vmatprep.subr.mxu0 0.0
    %409 = vmatpush1.msra.mxu0 0.0
    %410 = vmatprep.subr.mxu0 0.0
    %411 = vmatpush1.msra.mxu0 0.0
    %412 = vmatprep.subr.mxu0 0.0
    %413 = vmatpush1.msra.mxu0 0.0
    %414 = vmatprep.subr.mxu0 0.0
    %415 = vmatpush1.msra.mxu0 0.0
    %416 = vmatprep.subr.mxu0 0.0
    %417 = vmatpush1.msra.mxu0 0.0
    %418 = vmatprep.subr.mxu0 0.0
    %419 = vmatpush1.msra.mxu0 0.0
    %420 = vmatprep.subr.mxu0 0.0
    %421 = vmatpush1.msra.mxu0 0.0
    %422 = vmatprep.subr.mxu0 0.0
    %423 = vmatpush1.msra.mxu0 0.0
    %424 = vmatprep.subr.mxu0 0.0
    %425 = vmatpush1.msra.mxu0 0.0
    %426 = vmatprep.subr.mxu0 0.0
    %427 = vmatpush1.msra.mxu0 0.0
    %428 = vmatprep.subr.mxu0 0.0
    %429 = vmatpush1.msra.mxu0 0.0
    %430 = vmatprep.subr.mxu0 0.0
    %431 = vmatpush1.msra.mxu0 0.0
    %432 = vmatprep.subr.mxu0 0.0
    %433 = vmatpush1.msra.mxu0 0.0
    %434 = vmatprep.subr.mxu0 0.0
    %435 = vmatpush1.msra.mxu0 0.0
    %436 = vmatprep.subr.mxu0 0.0
    %437 = vmatpush1.msra.mxu0 0.0
    %438 = vmatprep.subr.mxu0 0.0
    %439 = vmatpush1.msra.mxu0 0.0
    %440 = vmatprep.subr.mxu0 0.0
    %441 = vmatpush1.msra.mxu0 0.0
    %442 = vmatprep.subr.mxu0 0.0
    %443 = vmatpush1.msra.mxu0 0.0
    %444 = vmatprep.subr.mxu0 0.0
    %445 = vmatpush1.msra.mxu0 0.0
    %446 = vmatprep.subr.mxu0 0.0
    %447 = vmatpush1.msra.mxu0 0.0
    %448 = vmatprep.subr.mxu0 0.0
    %449 = vmatpush1.msra.mxu0 0.0
    %450 = vmatprep.subr.mxu0 0.0
    %451 = vmatpush1.msra.mxu0 0.0
    %452 = vmatprep.subr.mxu0 0.0
    %453 = vmatpush1.msra.mxu0 0.0
    %454 = vmatprep.subr.mxu0 0.0
    %455 = vmatpush1.msra.mxu0 0.0
    %456 = vmatprep.mubr.f32.mxu0 0.0
    %457 = vmatmul.mubr.f32.gmra.mrb[0].mxu0 %v194
    %v458 = vpop.f32.mrb[0].mxu0
    %v459 = vadd.f32 0.0, %v458
    %v460 = vpop.f32.mrb[0].mxu0
    %461 = vmatprep.mubr.f32.mxu0 0.0
    %462 = vmatmul.mubr.f32.gmra.mrb[0].mxu0 %v197
    %v463 = vpop.f32.mrb[0].mxu0
    %v464 = vadd.f32 0.0, %v463
    %v465 = vpop.f32.mrb[0].mxu0
    %466 = vmatprep.mubr.f32.mxu0 0.0
    %467 = vmatmul.mubr.f32.gmra.mrb[0].mxu0 %v200
    %v468 = vpop.f32.mrb[0].mxu0
    %v469 = vadd.f32 0.0, %v468
    %v470 = vpop.f32.mrb[0].mxu0
    %471 = vmatprep.mubr.f32.mxu0 0.0
    %472 = vmatmul.mubr.f32.gmra.mrb[0].mxu0 %v203
    %v473 = vpop.f32.mrb[0].mxu0
    %v474 = vadd.f32 0.0, %v473
    %v475 = vpop.f32.mrb[0].mxu0
    %476 = vmatprep.mubr.f32.mxu0 0.0
    %477 = vmatmul.mubr.f32.gmra.mrb[0].mxu0 %v206
    %v478 = vpop.f32.mrb[0].mxu0
    %v479 = vadd.f32 0.0, %v478
    %v480 = vpop.f32.mrb[0].mxu0
    %481 = vmatprep.mubr.f32.mxu0 0.0
    %482 = vmatmul.mubr.f32.gmra.mrb[0].mxu0 %v209
    %v483 = vpop.f32.mrb[0].mxu0
    %v484 = vadd.f32 0.0, %v483
    %v485 = vpop.f32.mrb[0].mxu0
    %486 = vmatprep.mubr.f32.mxu0 0.0
    %487 = vmatmul.mubr.f32.gmra.mrb[0].mxu0 %v212
    %v488 = vpop.f32.mrb[0].mxu0
    %v489 = vadd.f32 0.0, %v488
    %v490 = vpop.f32.mrb[0].mxu0
    %491 = vmatprep.mubr.f32.mxu0 0.0
    %492 = vmatmul.mubr.f32.gmra.mrb[0].mxu0 %v215
    %v493 = vpop.f32.mrb[0].mxu0
    %v494 = vadd.f32 0.0, %v493
    %v495 = vpop.f32.mrb[0].mxu0
    %496 = vdwg.mxu0
    %v497 = vadd.f32 %v164, %v459
    %v498 = vadd.f32 %v165, %v464
    %v499 = vadd.f32 %v166, %v469
    %v500 = vadd.f32 %v167, %v474
    %v501 = vadd.f32 %v168, %v479
    %v502 = vadd.f32 %v169, %v484
    %v503 = vadd.f32 %v170, %v489
    %v504 = vadd.f32 %v171, %v494
    %v505 = vxor.u32 %v497, 2147483648
    %v506 = vxor.u32 %v498, 2147483648
    %v507 = vmul.f32 %v505, 1.442695
    %v508 = vpow.pop %v507
    %v509 = vmul.f32 %v506, 1.442695
    %v510 = vpow.pop %v509
    %v511 = vadd.f32 %v508, 1.0
    %v512 = vadd.f32 %v510, 1.0
    %v513 = vrcp.pop %v511
    %v514 = vmul.f32 1.0, %v513
    %v515 = vrcp.pop %v512
    %v516 = vmul.f32 1.0, %v515
    %v517 = vxor.u32 %v499, 2147483648
    %v518 = vxor.u32 %v500, 2147483648
    %v519 = vmul.f32 %v517, 1.442695
    %v520 = vpow.pop %v519
    %v521 = vmul.f32 %v518, 1.442695
    %v522 = vpow.pop %v521
    %v523 = vadd.f32 %v520, 1.0
    %v524 = vadd.f32 %v522, 1.0
    %v525 = vrcp.pop %v523
    %v526 = vmul.f32 1.0, %v525
    %v527 = vrcp.pop %v524
    %v528 = vmul.f32 1.0, %v527
    %v529 = vtanh.pop %v501
    %v530 = vtanh.pop %v502
    %v531 = vxor.u32 %v503, 2147483648
    %v532 = vxor.u32 %v504, 2147483648
    %v533 = vmul.f32 %v531, 1.442695
    %v534 = vpow.pop %v533
    %v535 = vmul.f32 %v532, 1.442695
    %v536 = vpow.pop %v535
    %v537 = vadd.f32 %v534, 1.0
    %v538 = vadd.f32 %v536, 1.0
    %v539 = vrcp.pop %v537
    %v540 = vmul.f32 1.0, %v539
    %v541 = vrcp.pop %v538
    %v542 = vmul.f32 1.0, %v541
    %v543 = vmul.f32 %v526, %v372
    %v544 = vmul.f32 %v528, %v373
    %v545 = vmul.f32 %v514, %v529
    %v546 = vmul.f32 %v516, %v530
    %v547 = vadd.f32 %v543, %v545
    %v548 = vadd.f32 %v544, %v546
    %v549 = vtanh.pop %v547
    %v550 = vtanh.pop %v548
    %v551 = vmul.f32 %v540, %v549
    %v552 = vmul.f32 %v542, %v550
    %553 = vset.pattern.permute.xlu0 1
    %554 = vperm.xlu0 %553, %v50
    %v555 = vpop.permute.xlu0 %554
    %557 = vset.pattern.permute.xlu0 1
    %558 = vperm.xlu0 %557, %v51
    %v559 = vpop.permute.xlu0 %558
    %v561 = vmul.f32 %v551, %v555
    %v562 = vmul.f32 %v552, %v559
    %v563 = vadd.f32 %v390, %v561
    %v564 = vadd.f32 %v391, %v562
    %565 = vmatprep.subr.mxu0 0.0
    %566 = vmatpush1.msra.mxu0 %v551
    %567 = vmatprep.subr.mxu0 0.0
    %568 = vmatpush1.msra.mxu0 %v552
    %569 = vmatprep.subr.mxu0 0.0
    %570 = vmatpush1.msra.mxu0 0.0
    %571 = vmatprep.subr.mxu0 0.0
    %572 = vmatpush1.msra.mxu0 0.0
    %573 = vmatprep.subr.mxu0 0.0
    %574 = vmatpush1.msra.mxu0 0.0
    %575 = vmatprep.subr.mxu0 0.0
    %576 = vmatpush1.msra.mxu0 0.0
    %577 = vmatprep.subr.mxu0 0.0
    %578 = vmatpush1.msra.mxu0 0.0
    %579 = vmatprep.subr.mxu0 0.0
    %580 = vmatpush1.msra.mxu0 0.0
    %581 = vmatprep.subr.mxu0 0.0
    %582 = vmatpush1.msra.mxu0 0.0
    %583 = vmatprep.subr.mxu0 0.0
    %584 = vmatpush1.msra.mxu0 0.0
    %585 = vmatprep.subr.mxu0 0.0
    %586 = vmatpush1.msra.mxu0 0.0
    %587 = vmatprep.subr.mxu0 0.0
    %588 = vmatpush1.msra.mxu0 0.0
    %589 = vmatprep.subr.mxu0 0.0
    %590 = vmatpush1.msra.mxu0 0.0
    %591 = vmatprep.subr.mxu0 0.0
    %592 = vmatpush1.msra.mxu0 0.0
    %593 = vmatprep.subr.mxu0 0.0
    %594 = vmatpush1.msra.mxu0 0.0
    %595 = vmatprep.subr.mxu0 0.0
    %596 = vmatpush1.msra.mxu0 0.0
    %597 = vmatprep.subr.mxu0 0.0
    %598 = vmatpush1.msra.mxu0 0.0
    %599 = vmatprep.subr.mxu0 0.0
    %600 = vmatpush1.msra.mxu0 0.0
    %601 = vmatprep.subr.mxu0 0.0
    %602 = vmatpush1.msra.mxu0 0.0
    %603 = vmatprep.subr.mxu0 0.0
    %604 = vmatpush1.msra.mxu0 0.0
    %605 = vmatprep.subr.mxu0 0.0
    %606 = vmatpush1.msra.mxu0 0.0
    %607 = vmatprep.subr.mxu0 0.0
    %608 = vmatpush1.msra.mxu0 0.0
    %609 = vmatprep.subr.mxu0 0.0
    %610 = vmatpush1.msra.mxu0 0.0
    %611 = vmatprep.subr.mxu0 0.0
    %612 = vmatpush1.msra.mxu0 0.0
    %613 = vmatprep.subr.mxu0 0.0
    %614 = vmatpush1.msra.mxu0 0.0
    %615 = vmatprep.subr.mxu0 0.0
    %616 = vmatpush1.msra.mxu0 0.0
    %617 = vmatprep.subr.mxu0 0.0
    %618 = vmatpush1.msra.mxu0 0.0
    %619 = vmatprep.subr.mxu0 0.0
    %620 = vmatpush1.msra.mxu0 0.0
    %621 = vmatprep.subr.mxu0 0.0
    %622 = vmatpush1.msra.mxu0 0.0
    %623 = vmatprep.subr.mxu0 0.0
    %624 = vmatpush1.msra.mxu0 0.0
    %625 = vmatprep.subr.mxu0 0.0
    %626 = vmatpush1.msra.mxu0 0.0
    %627 = vmatprep.subr.mxu0 0.0
    %628 = vmatpush1.msra.mxu0 0.0
    %629 = vmatprep.mubr.f32.mxu0 0.0
    %630 = vmatmul.mubr.f32.gmra.mrb[0].mxu0 %v194
    %v631 = vpop.f32.mrb[0].mxu0
    %v632 = vadd.f32 0.0, %v631
    %v633 = vpop.f32.mrb[0].mxu0
    %634 = vmatprep.mubr.f32.mxu0 0.0
    %635 = vmatmul.mubr.f32.gmra.mrb[0].mxu0 %v197
    %v636 = vpop.f32.mrb[0].mxu0
    %v637 = vadd.f32 0.0, %v636
    %v638 = vpop.f32.mrb[0].mxu0
    %639 = vmatprep.mubr.f32.mxu0 0.0
    %640 = vmatmul.mubr.f32.gmra.mrb[0].mxu0 %v200
    %v641 = vpop.f32.mrb[0].mxu0
    %v642 = vadd.f32 0.0, %v641
    %v643 = vpop.f32.mrb[0].mxu0
    %644 = vmatprep.mubr.f32.mxu0 0.0
    %645 = vmatmul.mubr.f32.gmra.mrb[0].mxu0 %v203
    %v646 = vpop.f32.mrb[0].mxu0
    %v647 = vadd.f32 0.0, %v646
    %v648 = vpop.f32.mrb[0].mxu0
    %649 = vmatprep.mubr.f32.mxu0 0.0
    %650 = vmatmul.mubr.f32.gmra.mrb[0].mxu0 %v206
    %v651 = vpop.f32.mrb[0].mxu0
    %v652 = vadd.f32 0.0, %v651
    %v653 = vpop.f32.mrb[0].mxu0
    %654 = vmatprep.mubr.f32.mxu0 0.0
    %655 = vmatmul.mubr.f32.gmra.mrb[0].mxu0 %v209
    %v656 = vpop.f32.mrb[0].mxu0
    %v657 = vadd.f32 0.0, %v656
    %v658 = vpop.f32.mrb[0].mxu0
    %659 = vmatprep.mubr.f32.mxu0 0.0
    %660 = vmatmul.mubr.f32.gmra.mrb[0].mxu0 %v212
    %v661 = vpop.f32.mrb[0].mxu0
    %v662 = vadd.f32 0.0, %v661
    %v663 = vpop.f32.mrb[0].mxu0
    %664 = vmatprep.mubr.f32.mxu0 0.0
    %665 = vmatmul.mubr.f32.gmra.mrb[0].mxu0 %v215
    %v666 = vpop.f32.mrb[0].mxu0
    %v667 = vadd.f32 0.0, %v666
    %v668 = vpop.f32.mrb[0].mxu0
    %669 = vdwg.mxu0
    %v670 = vadd.f32 %v184, %v632
    %v671 = vadd.f32 %v185, %v637
    %v672 = vadd.f32 %v186, %v642
    %v673 = vadd.f32 %v187, %v647
    %v674 = vadd.f32 %v188, %v652
    %v675 = vadd.f32 %v189, %v657
    %v676 = vadd.f32 %v190, %v662
    %v677 = vadd.f32 %v191, %v667
    %v678 = vxor.u32 %v670, 2147483648
    %v679 = vxor.u32 %v671, 2147483648
    %v680 = vmul.f32 %v678, 1.442695
    %v681 = vpow.pop %v680
    %v682 = vmul.f32 %v679, 1.442695
    %v683 = vpow.pop %v682
    %v684 = vadd.f32 %v681, 1.0
    %v685 = vadd.f32 %v683, 1.0
    %v686 = vrcp.pop %v684
    %v687 = vmul.f32 1.0, %v686
    %v688 = vrcp.pop %v685
    %v689 = vmul.f32 1.0, %v688
    %v690 = vxor.u32 %v672, 2147483648
    %v691 = vxor.u32 %v673, 2147483648
    %v692 = vmul.f32 %v690, 1.442695
    %v693 = vpow.pop %v692
    %v694 = vmul.f32 %v691, 1.442695
    %v695 = vpow.pop %v694
    %v696 = vadd.f32 %v693, 1.0
    %v697 = vadd.f32 %v695, 1.0
    %v698 = vrcp.pop %v696
    %v699 = vmul.f32 1.0, %v698
    %v700 = vrcp.pop %v697
    %v701 = vmul.f32 1.0, %v700
    %v702 = vtanh.pop %v674
    %v703 = vtanh.pop %v675
    %v704 = vxor.u32 %v676, 2147483648
    %v705 = vxor.u32 %v677, 2147483648
    %v706 = vmul.f32 %v704, 1.442695
    %v707 = vpow.pop %v706
    %v708 = vmul.f32 %v705, 1.442695
    %v709 = vpow.pop %v708
    %v710 = vadd.f32 %v707, 1.0
    %v711 = vadd.f32 %v709, 1.0
    %v712 = vrcp.pop %v710
    %v713 = vmul.f32 1.0, %v712
    %v714 = vrcp.pop %v711
    %v715 = vmul.f32 1.0, %v714
    %v716 = vmul.f32 %v699, %v547
    %v717 = vmul.f32 %v701, %v548
    %v718 = vmul.f32 %v687, %v702
    %v719 = vmul.f32 %v689, %v703
    %v720 = vadd.f32 %v716, %v718
    %v721 = vadd.f32 %v717, %v719
    %v722 = vtanh.pop %v720
    %v723 = vtanh.pop %v721
    %v724 = vmul.f32 %v713, %v722
    %v725 = vmul.f32 %v715, %v723
    %726 = vset.pattern.permute.xlu0 2
    %727 = vperm.xlu0 %726, %v50
    %v728 = vpop.permute.xlu0 %727
    %730 = vset.pattern.permute.xlu0 2
    %731 = vperm.xlu0 %730, %v51
    %v732 = vpop.permute.xlu0 %731
    %v734 = vmul.f32 %v724, %v728
    %v735 = vmul.f32 %v725, %v732
    %v736 = vadd.f32 %v563, %v734
    %v737 = vadd.f32 %v564, %v735
    %v738 = vadd.f32 %v736, %v737
    %v739 = vrot.slane %v738, 4
    %v740 = vadd.f32 %v738, %v739
    %v741 = vrot.slane %v740, 2
    %v742 = vadd.f32 %v740, %v741
    %v743 = vrot.slane %v742, 1
    %v744 = vadd.f32 %v742, %v743
    %s745 = sld [smem:[#allocation2]]
    %v746 = vstv %s745
    %v747 = vadd.f32 %v744, %v746
    %748 = vst [vmem:[#allocation3] sm:$0x1] %v747
    // Predicated region
    $region26: #{tpu_custom_call.1} parent=1 // pred_check
      _
    $region27: #{tpu_custom_call.1} parent=1 // pred_check_branch
      %750 = sbr.rel (0) target = $region29
    $region28: #{tpu_custom_call.1} parent=1 // pred_region
      %s752 = ssub.s32 16, 16
      %753 = vsyncadd [#allocation4], %s752
      %s755 = sshll.u32 [#allocation3], 4
      %s756 = int_to_ptr.vmem [resolvable:$true] %s755
      %758 = dma.vmem_to_hbm [thread:$0]  %s756, 16, %s6, [#allocation4]
    $region29: #{tpu_custom_call.1} parent=1 // pred_fallthru
      _
    // Predicated region
    $region30: #{tpu_custom_call.1} parent=1 // pred_check
      _
    $region31: #{tpu_custom_call.1} parent=1 // pred_check_branch
      %760 = sbr.rel (0) target = $region33
    $region32: #{tpu_custom_call.1} parent=1 // pred_region
      %761 = dma.done [#allocation4], 16
    $region33: #{tpu_custom_call.1} parent=1 // pred_fallthru
      _
    %762 = vsyncpa [#allocation4], 1

</llo_original>
